<compile_context>
chip_gen: v7x
topology: tpu7x:2x2x1
jax: 0.10.0
libtpu: 0.0.40
codegen_flags: <defaults>
</compile_context>

<pallas_src>
import functools

import jax
import jax.numpy as jnp
from jax.experimental import pallas as pl
from jax.experimental.pallas import tpu as pltpu


def _gce_kernel(*refs, smooth, hw, tile_hw, ignore_index, has_back,
                need_mask, num_inner, num_outer):
    if has_back:
        tmin_ref, inv_ref, logits_ref, labels_ref, back_ref, out_ref = refs
    else:
        tmin_ref, logits_ref, labels_ref, out_ref = refs

    so = pl.program_id(1)   # outer spatial chunk (parallel)
    si = pl.program_id(2)   # inner spatial block (reduction, resident output)

    # Output block (per (n, outer-chunk)) is resident across the inner
    # ("arbitrary") axis -> use it directly as the lane-dense accumulator.
    @pl.when(si == 0)
    def _():
        out_ref[...] = jnp.zeros_like(out_ref)

    x = logits_ref[...].astype(jnp.float32)                   # (1, C, T)
    C = x.shape[1]

    # Fused ignore-index rewrite (torch: target[target==255] = target.min()).
    labels = labels_ref[...]                                   # (1, 1, T) int32
    labels = jnp.where(labels == ignore_index, tmin_ref[0], labels)

    # Softmax pieces over the channel (sublane) axis.
    m = jnp.max(x, axis=1, keepdims=True)                      # (1, 1, T)
    denom = jnp.sum(jnp.exp(x - m), axis=1, keepdims=True)     # (1, 1, T)

    # True-class logit via a tiny (1,C,1) iota (compare broadcasts over lanes).
    chan = jax.lax.broadcasted_iota(jnp.int32, (1, C, 1), 1)   # (1, C, 1)
    x_true = jnp.sum(jnp.where(chan == labels, x, 0.0),
                     axis=1, keepdims=True)                    # (1, 1, T)
    # TODO(synk): if every pixel is ignore_index (out-of-range class), torch's
    # one-hot scatter would error; here x_true falls back to 0 logit instead.

    # log p_true ; accumulate inter**smooth in log space (no recip / pow).
    log_p = (x_true - m) - jnp.log(denom)                      # (1, 1, T)
    if has_back:
        b = back_ref[...].astype(jnp.float32)                  # (1, 1, T)
        # backf = 0.1*(b==0)/backpercent + b  ==  where(b==0, 0.1/pct, b)
        backf = jnp.where(b == 0.0, inv_ref[0], b)
        log_p = log_p + jnp.log(backf)

    term = jnp.exp(smooth * log_p)                             # inter ** smooth

    if need_mask:
        # Only the globally-last spatial block has a ragged (padded) tail.
        is_tail = jnp.logical_and(so == num_outer - 1, si == num_inner - 1)

        @pl.when(is_tail)
        def _():
            sb = so * num_inner + si
            col = (jax.lax.broadcasted_iota(jnp.int32, term.shape, 2)
                   + sb * tile_hw)
            out_ref[...] += jnp.where(col < hw, term, 0.0)

        @pl.when(jnp.logical_not(is_tail))
        def _():
            out_ref[...] += term
    else:
        out_ref[...] += term


def gce_loss(output, target, backlabel=None, smooth=0.4, ignore_index=255,
             max_stream_bytes=8 << 20):
    """output: (N, C, H, W) float logits; target: (N, H, W) int labels."""
    N, C, H, W = output.shape
    HW = H * W
    M = N * HW

    # --- free reshapes (no transpose): channels on sublanes, spatial on lanes
    logits = output.reshape(N, C, HW)
    labels = target.astype(jnp.int32).reshape(N, 1, HW)        # raw labels (255 kept)
    tmin_arr = jnp.min(labels).reshape(1).astype(jnp.int32)    # single reduce only

    has_back = backlabel is not None
    if has_back:
        back = backlabel.astype(jnp.float32).reshape(N, 1, HW)  # raw backlabel
        backpercent = jnp.mean((backlabel == 0).astype(jnp.float32))
        # Note: if backlabel has no zeros this scalar is inf but the in-kernel
        # select never uses it (more robust than torch's 0/0 -> NaN).
        inv_arr = (0.1 / backpercent).reshape(1).astype(jnp.float32)

    # --- generation-aware tile sizing -------------------------------------
    in_itemsize = jnp.dtype(output.dtype).itemsize
    stream_per_px = C * in_itemsize + 4 + (4 if has_back else 0)

    try:
        info = pltpu.get_tpu_info()
        vmem_cap = int(getattr(info, "vmem_capacity_bytes", 0)) or (64 << 20)
    except Exception:  # pragma: no cover - CPU / query failure fallback
        vmem_cap = 64 << 20
    vmem_budget = int(min(vmem_cap * 3 // 4, 100 << 20))       # ~48 MiB v7x, ~96 MiB v5e/v6e

    # VMEM bytes per pixel of tile: double-buffered input blocks + f32 compute
    # temporaries (~6 live C-wide f32 arrays) + per-pixel f32 vectors + output.
    vmem_per_px = 2 * stream_per_px + 6 * C * 4 + 96

    cap = min(max_stream_bytes // stream_per_px, vmem_budget // vmem_per_px)
    cap = int(max(128, (cap // 128) * 128))

    if HW <= cap:
        tile_hw = HW                   # full extent (always a legal block dim)
        need_mask = False
    else:
        tile_hw = cap                  # multiple of 128
        need_mask = (HW % tile_hw) != 0
    num_sb = -(-HW // tile_hw)

    # Second "parallel" axis so both v7x TensorCores are busy for odd / small N.
    num_outer = 2 if (N % 2 == 1 and num_sb % 2 == 0) else 1
    num_inner = num_sb // num_outer
    grid = (N, num_outer, num_inner)

    in_specs = [
        pl.BlockSpec((1, C, tile_hw),
                     lambda n, so, si, *_: (n, 0, so * num_inner + si)),
        pl.BlockSpec((1, 1, tile_hw),
                     lambda n, so, si, *_: (n, 0, so * num_inner + si)),
    ]
    args = [logits, labels]
    if has_back:
        in_specs.append(
            pl.BlockSpec((1, 1, tile_hw),
                         lambda n, so, si, *_: (n, 0, so * num_inner + si)))
        args.append(back)

    out_spec = pl.BlockSpec((1, 1, tile_hw), lambda n, so, si, *_: (n, so, 0))

    scalars = [tmin_arr, inv_arr] if has_back else [tmin_arr]
    num_prefetch = len(scalars)

    partial_sums = pl.pallas_call(
        functools.partial(_gce_kernel, smooth=float(smooth), hw=HW,
                          tile_hw=tile_hw, ignore_index=int(ignore_index),
                          has_back=has_back, need_mask=need_mask,
                          num_inner=num_inner, num_outer=num_outer),
        out_shape=jax.ShapeDtypeStruct((N, num_outer, tile_hw), jnp.float32),
        grid_spec=pltpu.PrefetchScalarGridSpec(
            num_scalar_prefetch=num_prefetch,
            grid=grid,
            in_specs=in_specs,
            out_specs=out_spec,
        ),
        compiler_params=pltpu.CompilerParams(
            dimension_semantics=("parallel", "parallel", "arbitrary"),
            vmem_limit_bytes=vmem_budget,
        ),
    )(*scalars, *args)

    # Kernel accumulated sum(inter**smooth); finish the loss in the wrapper:
    # mean((1 - inter**smooth)/smooth) = (M - sum) / (smooth * M).
    total = jnp.sum(partial_sums, dtype=jnp.float32)
    return (M - total) / (smooth * M)


def _reference(output, target, backlabel=None, smooth=0.4, ignore_index=255):
    # pure-JAX reference mirroring the PyTorch forward
    N, C, H, W = output.shape
    tmin = jnp.min(target)
    target = jnp.where(target == ignore_index, tmin, target).astype(jnp.int32)
    if backlabel is not None:
        backlabel = backlabel.astype(jnp.float32)
        backpercent = jnp.sum(backlabel == 0) / (
            backlabel.shape[1] * backlabel.shape[2] * backlabel.shape[0])
        backf = 0.1 * (backlabel == 0).astype(jnp.float32) / backpercent + backlabel
    else:
        backf = 1.0
    onehot = jax.nn.one_hot(target, C, axis=1, dtype=jnp.float32)   # (N,C,H,W)
    probs = jax.nn.softmax(output, axis=1)
    inter = jnp.sum(probs * onehot, axis=1) * backf                 # (N,H,W)
    loss = (1.0 - inter ** smooth) / smooth
    return jnp.mean(loss)


if __name__ == "__main__":
    key = jax.random.PRNGKey(0)
    k1, k2, k3 = jax.random.split(key, 3)

    N, C, H, W = 2, 4, 16, 16
    logits = jax.random.normal(k1, (N, C, H, W), dtype=jnp.float32)
    labels = jax.random.randint(k2, (N, H, W), 0, C, dtype=jnp.int32)
    # sprinkle a few ignore-index pixels to exercise the 255 path
    labels = labels.at[0, 0, 0].set(255).at[1, 3, 5].set(255)

    # 1) backlabel=None path (no extra stream)
    loss = jax.block_until_ready(gce_loss(logits, labels, backlabel=None,
                                          smooth=0.4))
    ref = _reference(logits, labels, backlabel=None, smooth=0.4)
    assert jnp.allclose(loss, ref, atol=1e-4, rtol=1e-4), (loss, ref)

    # 2) backlabel path (per-pixel scaling with background re-weighting)
    backlabel = jax.random.bernoulli(k3, 0.7, (N, H, W)).astype(jnp.float32)
    loss_b = jax.block_until_ready(gce_loss(logits, labels, backlabel=backlabel,
                                            smooth=0.4))
    ref_b = _reference(logits, labels, backlabel=backlabel, smooth=0.4)
    assert jnp.allclose(loss_b, ref_b, atol=1e-4, rtol=1e-4), (loss_b, ref_b)

    print("KERNEL_OK")
</pallas_src>

<mosaic_0001>
module attributes {stable_mosaic.version = 11 : i64} {
  func.func @_gce_kernel(%arg0: i32, %arg1: i32, %arg2: i32, %arg3: memref<1xi32, #tpu.memory_space<smem>>, %arg4: memref<1x4x256xf32, #tpu.memory_space<vmem>>, %arg5: memref<1x1x256xi32, #tpu.memory_space<vmem>>, %arg6: memref<1x1x256xf32, #tpu.memory_space<vmem>>) attributes {dimension_semantics = [#tpu.dimension_semantics<parallel>, #tpu.dimension_semantics<parallel>, #tpu.dimension_semantics<arbitrary>], iteration_bounds = array<i64: 2, 1, 1>, scalar_prefetch = 1 : i64, scratch_operands = 0 : i64, tpu.core_type = #tpu.core_type<tc>, window_params = [{transform_indices = @transform_0, window_bounds = array<i64: 1, 4, 256>}, {transform_indices = @transform_1, window_bounds = array<i64: 1, 1, 256>}, {transform_indices = @transform_2, window_bounds = array<i64: 1, 1, 256>}]} {
    %c0_i32 = arith.constant 0 : i32
    %0 = arith.cmpi eq, %arg2, %c0_i32 : i32
    %1 = arith.extui %0 : i1 to i32
    %c0_i32_0 = arith.constant 0 : i32
    %2 = arith.cmpi ne, %1, %c0_i32_0 : i32
    scf.if %2 {
      %cst_17 = arith.constant 0.000000e+00 : f32
      %34 = vector.broadcast %cst_17 : f32 to vector<1x1x256xf32>
      %c0_18 = arith.constant 0 : index
      %c0_19 = arith.constant 0 : index
      %c0_20 = arith.constant 0 : index
      %35 = vector.load %arg6[%c0_18, %c0_19, %c0_20] : memref<1x1x256xf32, #tpu.memory_space<vmem>>, vector<1x1x256xf32>
      tpu.vector_store %arg6[%c0_18, %c0_19, %c0_20], %34 {strides = array<i32>} : memref<1x1x256xf32, #tpu.memory_space<vmem>>, vector<1x1x256xf32>,
    } else {
    }
    %c0 = arith.constant 0 : index
    %c0_1 = arith.constant 0 : index
    %c0_2 = arith.constant 0 : index
    %3 = vector.load %arg4[%c0, %c0_1, %c0_2] : memref<1x4x256xf32, #tpu.memory_space<vmem>>, vector<1x4x256xf32>
    %c0_3 = arith.constant 0 : index
    %c0_4 = arith.constant 0 : index
    %c0_5 = arith.constant 0 : index
    %4 = vector.load %arg5[%c0_3, %c0_4, %c0_5] : memref<1x1x256xi32, #tpu.memory_space<vmem>>, vector<1x1x256xi32>
    %c255_i32 = arith.constant 255 : i32
    %5 = vector.broadcast %c255_i32 : i32 to vector<1x1x256xi32>
    %6 = arith.cmpi eq, %4, %5 : vector<1x1x256xi32>
    %c0_6 = arith.constant 0 : index
    %7 = memref.load %arg3[%c0_6] : memref<1xi32, #tpu.memory_space<smem>>
    %8 = vector.broadcast %7 : i32 to vector<1x1x256xi32>
    %9 = arith.select %6, %8, %4 : vector<1x1x256xi1>, vector<1x1x256xi32>
    %cst = arith.constant dense<0xFF800000> : vector<1x256xf32>
    %10 = vector.multi_reduction <maximumf>, %3, %cst [1] : vector<1x4x256xf32> to vector<1x256xf32>
    %11 = vector.shape_cast %10 : vector<1x256xf32> to vector<1x1x256xf32>
    %12 = vector.broadcast %11 : vector<1x1x256xf32> to vector<1x4x256xf32>
    %13 = arith.subf %3, %12 : vector<1x4x256xf32>
    %14 = math.exp %13 : vector<1x4x256xf32>
    %cst_7 = arith.constant dense<0.000000e+00> : vector<1x256xf32>
    %15 = vector.multi_reduction <add>, %14, %cst_7 [1] : vector<1x4x256xf32> to vector<1x256xf32>
    %16 = vector.shape_cast %15 : vector<1x256xf32> to vector<1x1x256xf32>
    %17 = tpu.iota {dimensions = array<i32: 1>} : vector<1x4x1xi32>
    %18 = vector.broadcast %17 : vector<1x4x1xi32> to vector<1x4x256xi32>
    %19 = vector.broadcast %9 : vector<1x1x256xi32> to vector<1x4x256xi32>
    %20 = arith.cmpi eq, %18, %19 : vector<1x4x256xi32>
    %cst_8 = arith.constant 0.000000e+00 : f32
    %21 = vector.broadcast %cst_8 : f32 to vector<1x4x256xf32>
    %22 = arith.select %20, %3, %21 : vector<1x4x256xi1>, vector<1x4x256xf32>
    %cst_9 = arith.constant dense<0.000000e+00> : vector<1x256xf32>
    %23 = vector.multi_reduction <add>, %22, %cst_9 [1] : vector<1x4x256xf32> to vector<1x256xf32>
    %24 = vector.shape_cast %23 : vector<1x256xf32> to vector<1x1x256xf32>
    %25 = arith.subf %24, %11 : vector<1x1x256xf32>
    %26 = math.log %16 : vector<1x1x256xf32>
    %27 = arith.subf %25, %26 : vector<1x1x256xf32>
    %cst_10 = arith.constant 4.000000e-01 : f32
    %28 = vector.broadcast %cst_10 : f32 to vector<1x1x256xf32>
    %29 = arith.mulf %28, %27 : vector<1x1x256xf32>
    %30 = math.exp %29 : vector<1x1x256xf32>
    %c0_11 = arith.constant 0 : index
    %c0_12 = arith.constant 0 : index
    %c0_13 = arith.constant 0 : index
    %31 = vector.load %arg6[%c0_11, %c0_12, %c0_13] : memref<1x1x256xf32, #tpu.memory_space<vmem>>, vector<1x1x256xf32>
    %32 = arith.addf %31, %30 : vector<1x1x256xf32>
    %c0_14 = arith.constant 0 : index
    %c0_15 = arith.constant 0 : index
    %c0_16 = arith.constant 0 : index
    %33 = vector.load %arg6[%c0_14, %c0_15, %c0_16] : memref<1x1x256xf32, #tpu.memory_space<vmem>>, vector<1x1x256xf32>
    tpu.vector_store %arg6[%c0_14, %c0_15, %c0_16], %32 {strides = array<i32>} : memref<1x1x256xf32, #tpu.memory_space<vmem>>, vector<1x1x256xf32>,
    return
  }
  func.func @transform_0(%arg0: i32, %arg1: i32, %arg2: i32, %arg3: memref<1xi32, #tpu.memory_space<smem>>) -> (i32, i32, i32) {
    %c1_i32 = arith.constant 1 : i32
    %0 = arith.muli %arg1, %c1_i32 : i32
    %1 = arith.addi %0, %arg2 : i32
    %c0_i32 = arith.constant 0 : i32
    %c0_i32_0 = arith.constant 0 : i32
    return %arg0, %c0_i32, %1 : i32, i32, i32
  }
  func.func @transform_1(%arg0: i32, %arg1: i32, %arg2: i32, %arg3: memref<1xi32, #tpu.memory_space<smem>>) -> (i32, i32, i32) {
    %c1_i32 = arith.constant 1 : i32
    %0 = arith.muli %arg1, %c1_i32 : i32
    %1 = arith.addi %0, %arg2 : i32
    %c0_i32 = arith.constant 0 : i32
    %c0_i32_0 = arith.constant 0 : i32
    return %arg0, %c0_i32, %1 : i32, i32, i32
  }
  func.func @transform_2(%arg0: i32, %arg1: i32, %arg2: i32, %arg3: memref<1xi32, #tpu.memory_space<smem>>) -> (i32, i32, i32) {
    %c0_i32 = arith.constant 0 : i32
    %c0_i32_0 = arith.constant 0 : i32
    return %arg0, %arg1, %c0_i32 : i32, i32, i32
  }
}

</mosaic_0001>

<llo_original>
// kernel: tpu_custom_call.1
$region0: #{tpu_custom_call.1}
  #allocation0 [shape = 'u32[]', space=smem, size = 0x4, offset = 0x4, fixed_abs, tag = 'smem constant byte address 0x4 - core index']
  #allocation1 [shape = 'u32[144,128]{1,0:T(1,128)}', space=vmem, size = 0x12000, scoped, tag = 'internal scratch']
  #allocation2 [shape = 's32[1]{0}', space=sflag, size = 0x4, scoped, tag = 'scoped memory for tpu_custom_call.1']
  #allocation3 [shape = 's32[1]{0:T(128)S(6)}', space=smem, size = 0x200, scoped, tag = 'prefetched SMEM operand 0']
  %s0 = inlined_call_operand.<no memory space> [shape: s32[1], index: 0, kind: input, shape index: {}]
  %s1 = inlined_call_operand.hbm [shape: f32[2,4,256], index: 1, kind: input, shape index: {}]
  %s2 = inlined_call_operand.vmem [shape: s32[2,1,256], index: 2, kind: input, shape index: {}]
  %s3 = inlined_call_operand.hbm [shape: f32[2,1,256], index: 3, kind: output, shape index: {}]
  %s4 = sld [smem:[#allocation0]]
  $region49: #{tpu_custom_call.1} parent=0
    _
  %s6 = ssub.s32 1, %s4
  %s7 = scalar_select 0, %s6, %s4
  %8 = sst [smem:[#allocation3]] %s0
  $region1: #{tpu_custom_call.1} parent=0
    #allocation4 [shape = 'u8[8192]{0}', space=vmem, size = 0x2000, scoped, tag = 'input window, operand 1']
    #allocation5 [shape = 's32[2]{0}', space=sflag, size = 0x8, scoped, tag = 'scoped memory for tpu_custom_call.1']
    #allocation6 [shape = 's32[2]{0}', space=sflag, size = 0x8, scoped, tag = 'scoped memory for tpu_custom_call.1']
    #allocation7 [shape = 'u8[2048]{0}', space=vmem, size = 0x800, scoped, tag = 'output window, operand 0']
    %9 = vsyncpa [#allocation5], 0
    %s10 = scalar_lea.sflag [#allocation5], 1
    %11 = vsyncpa %s10, 0
    %12 = vsyncpa [#allocation6], 0
    %s13 = scalar_lea.sflag [#allocation6], 1
    %14 = vsyncpa %s13, 0
    loop: start=0, step=1, limit=4
    $region2: #{tpu_custom_call.1} parent=1 // loop_pre_header
      _
    $region3: #{tpu_custom_call.1} parent=1 // loop_header
      %s16 = sphi 0, %s20
      %p17 = scmp.ge.s32.totalorder %s16, 4
      %s23 = sphi 0, %s42
      %s24 = sphi 0, %s38
      %s25 = sphi 0, %s34
      %s26 = sphi 0, %s23
      %s27 = sphi 0, %s24
      %s28 = sphi 0, %s25
      %s29 = sphi 0, %s26
      %s30 = sphi 0, %s27
      %s31 = sphi 0, %s28
      %s49 = sphi 0, %s51
      %s52 = sphi 0, %s49
      %s53 = sphi 0, %s52
      %s69 = sphi 0, %s53
      %s79 = sphi 0, %s81
      %s82 = sphi 0, %s79
      %s83 = sphi 0, %s82
      %s99 = sphi 0, %s83
      %s107 = sphi 0, %s109
      %s110 = sphi 0, %s107
      %s111 = sphi 0, %s110
      %s127 = sphi 0, %s111
    $region4: #{tpu_custom_call.1} parent=1 // loop_header_branch
      %19 = sbr.rel (%p17) target = $region8
    $region5: #{tpu_custom_call.1} parent=1 // loop_body
      %s21 = ssub.s32 %s16, 1
      %s22 = ssub.s32 %s16, 2
      %s32 = sadd.s32 1, %s25
      %p33 = scmp.ge.s32.totalorder %s32, 1
      %s34 = scalar_select %p33, 0, %s32
      %s35 = sadd.s32 1, %s24
      %s36 = scalar_select %p33, %s35, %s24
      %p37 = scmp.ge.s32.totalorder %s36, 1
      %s38 = scalar_select %p37, 0, %s36
      %s39 = sadd.s32 1, %s23
      %s40 = scalar_select %p37, %s39, %s23
      %p41 = scmp.ge.s32.totalorder %s40, 2
      %s42 = scalar_select %p41, 0, %s40
      %s43 = sadd.s32 %s24, %s25
      %s44 = sadd.s32 %s38, %s34
      %s45 = ssub.s32 %s23, %s42
      %s46 = ssub.s32 %s43, %s44
      %s47 = sor.u32 %s45, %s46
      %p48 = scmp.eq.s32.totalorder %s47, 0
      %s50 = sadd.s32 %s49, 1
      %s51 = scalar_select %p48, %s49, %s50
      %p54 = pneg %p48
      %p55 = scmp.eq.s32.totalorder %s16, 1
      %p56 = por %p54, %p55
      %p57 = scmp.ne.s32.totalorder %s49, %s52
      %p58 = scmp.eq.s32.totalorder %s16, 0
      %p59 = por %p57, %p58
      %p60 = scmp.ne.s32.totalorder %s49, %s52
      %p61 = scmp.eq.s32.totalorder %s21, 1
      %p62 = por %p60, %p61
      %p63 = scmp.ne.s32.totalorder %s52, %s53
      %p64 = scmp.eq.s32.totalorder %s21, 0
      %p65 = por %p63, %p64
      %p66 = scmp.ne.s32.totalorder %s52, %s53
      %p67 = scmp.eq.s32.totalorder %s22, 1
      %p68 = por %p66, %p67
      %p70 = scmp.ne.s32.totalorder %s53, %s69
      %p71 = scmp.eq.s32.totalorder %s22, 0
      %p72 = por %p70, %p71
      %s73 = sadd.s32 %s24, %s25
      %s74 = sadd.s32 %s38, %s34
      %s75 = ssub.s32 %s23, %s42
      %s76 = ssub.s32 %s73, %s74
      %s77 = sor.u32 %s75, %s76
      %p78 = scmp.eq.s32.totalorder %s77, 0
      %s80 = sadd.s32 %s79, 1
      %s81 = scalar_select %p78, %s79, %s80
      %p84 = pneg %p78
      %p85 = scmp.eq.s32.totalorder %s16, 1
      %p86 = por %p84, %p85
      %p87 = scmp.ne.s32.totalorder %s79, %s82
      %p88 = scmp.eq.s32.totalorder %s16, 0
      %p89 = por %p87, %p88
      %p90 = scmp.ne.s32.totalorder %s79, %s82
      %p91 = scmp.eq.s32.totalorder %s21, 1
      %p92 = por %p90, %p91
      %p93 = scmp.ne.s32.totalorder %s82, %s83
      %p94 = scmp.eq.s32.totalorder %s21, 0
      %p95 = por %p93, %p94
      %p96 = scmp.ne.s32.totalorder %s82, %s83
      %p97 = scmp.eq.s32.totalorder %s22, 1
      %p98 = por %p96, %p97
      %p100 = scmp.ne.s32.totalorder %s83, %s99
      %p101 = scmp.eq.s32.totalorder %s22, 0
      %p102 = por %p100, %p101
      %s103 = ssub.s32 %s23, %s42
      %s104 = ssub.s32 %s24, %s38
      %s105 = sor.u32 %s103, %s104
      %p106 = scmp.eq.s32.totalorder %s105, 0
      %s108 = sadd.s32 %s107, 1
      %s109 = scalar_select %p106, %s107, %s108
      %p112 = pneg %p106
      %p113 = scmp.eq.s32.totalorder %s16, 1
      %p114 = por %p112, %p113
      %p115 = scmp.ne.s32.totalorder %s107, %s110
      %p116 = scmp.eq.s32.totalorder %s16, 0
      %p117 = por %p115, %p116
      %p118 = scmp.ne.s32.totalorder %s107, %s110
      %p119 = scmp.eq.s32.totalorder %s21, 1
      %p120 = por %p118, %p119
      %p121 = scmp.ne.s32.totalorder %s110, %s111
      %p122 = scmp.eq.s32.totalorder %s21, 0
      %p123 = por %p121, %p122
      %p124 = scmp.ne.s32.totalorder %s110, %s111
      %p125 = scmp.eq.s32.totalorder %s22, 1
      %p126 = por %p124, %p125
      %p128 = scmp.ne.s32.totalorder %s111, %s127
      %p129 = scmp.eq.s32.totalorder %s22, 0
      %p130 = por %p128, %p129
      %p131 = scmp.le.s32.totalorder 1, %s16
      %p132 = scmp.lt.s32.totalorder %s16, 3
      %p133 = pnand %p131, %p132
      %p134 = pneg %p133
      // Predicated region
      $region9: #{tpu_custom_call.1} parent=5 // pred_check
        _
      $region10: #{tpu_custom_call.1} parent=5 // pred_check_branch
        %136 = sbr.rel (%p133) target = $region12
      $region11: #{tpu_custom_call.1} parent=5 // pred_region
        %s137 = ssub.s32 %s16, 1
      $region12: #{tpu_custom_call.1} parent=5 // pred_fallthru
        _
      %p138 = scmp.lt.s32.totalorder %s16, 2
      // Predicated region
      $region13: #{tpu_custom_call.1} parent=5 // pred_check
        %p139 = pneg %p138
      $region14: #{tpu_custom_call.1} parent=5 // pred_check_branch
        %141 = sbr.rel (%p139) target = $region16
      $region15: #{tpu_custom_call.1} parent=5 // pred_region
        // Predicated region
        $region17: #{tpu_custom_call.1} parent=15 // pred_check
          %p142 = pneg %p59
        $region18: #{tpu_custom_call.1} parent=15 // pred_check_branch
          %144 = sbr.rel (%p142) target = $region20
        $region19: #{tpu_custom_call.1} parent=15 // pred_region
          %s145 = sand.u32 %s49, 1
          %s146 = scalar_lea.sflag [#allocation5], %s145
          %s147 = sand.u32 %s49, 1
          %s148 = smul.addr %s147, 8
          %s149 = scalar_lea.vmem [#allocation4], %s148
          %s150 = sadd.s32 %s24, %s25
          %s151 = smul.u32 2, %s150
          %s153 = ssub.s32 128, 128
          %154 = vsyncadd %s146, %s153
          %s155 = smul.addr %s23, 2
          %s156 = sadd.s32 %s151, %s155
          %s157 = smul.addr %s156, 64
          %s158 = scalar_lea.hbm %s1, %s157
          %s160 = sshll.u32 %s149, 4
          %s161 = int_to_ptr.vmem [resolvable:$true] %s160
          %163 = dma.hbm_to_vmem [thread:$0]  %s158, 128, %s161, %s146
        $region20: #{tpu_custom_call.1} parent=15 // pred_fallthru
          _
        // Predicated region
        $region21: #{tpu_custom_call.1} parent=15 // pred_check
          %p164 = pneg %p89
        $region22: #{tpu_custom_call.1} parent=15 // pred_check_branch
          %166 = sbr.rel (%p164) target = $region24
        $region23: #{tpu_custom_call.1} parent=15 // pred_region
          %s167 = sadd.s32 %s24, %s25
          %s168 = smul.u32 2, %s167
          %p169 = scmp.lt.s32.totalorder %s23, 1
          %s170 = scalar_select %p169, %s23, 1
          %p171 = scmp.lt.s32.totalorder %s168, 1
          %s172 = scalar_select %p171, %s168, 1
          %s173 = smul.addr %s170, 2
          %s174 = sadd.s32 %s172, %s173
          %s175 = scalar_lea.vmem %s2, %s174
          %s176 = sadd.s32 %s24, %s25
          %s177 = smul.u32 2, %s176
        $region24: #{tpu_custom_call.1} parent=15 // pred_fallthru
          _
      $region16: #{tpu_custom_call.1} parent=5 // pred_fallthru
        _
      %p178 = scmp.le.s32.totalorder 1, %s16
      %p179 = scmp.lt.s32.totalorder %s16, 3
      %p180 = pnand %p178, %p179
      %p181 = pneg %p180
      // Predicated region
      $region25: #{tpu_custom_call.1} parent=5 // pred_check
        _
      $region26: #{tpu_custom_call.1} parent=5 // pred_check_branch
        %183 = sbr.rel (%p180) target = $region28
      $region27: #{tpu_custom_call.1} parent=5 // pred_region
        %s184 = ssub.s32 %s16, 1
        %s185 = sand.u32 %s52, 1
        %s186 = scalar_lea.sflag [#allocation5], %s185
        %s187 = sand.u32 %s52, 1
        %s188 = smul.addr %s187, 8
        %s189 = scalar_lea.vmem [#allocation4], %s188
        // Predicated region
        $region29: #{tpu_custom_call.1} parent=27 // pred_check
          %p190 = pneg %p65
        $region30: #{tpu_custom_call.1} parent=27 // pred_check_branch
          %192 = sbr.rel (%p190) target = $region32
        $region31: #{tpu_custom_call.1} parent=27 // pred_region
          %193 = dma.done %s186, 128
        $region32: #{tpu_custom_call.1} parent=27 // pred_fallthru
          _
        %s194 = sand.u32 %s52, 1
        %s195 = scalar_lea.sflag [#allocation5], %s194
        %s196 = sand.u32 %s52, 1
        %s197 = smul.addr %s196, 8
        %s198 = scalar_lea.vmem [#allocation4], %s197
        %p199 = pneg %p65
        %p200 = pneg %p62
        %s201 = sadd.s32 %s27, %s28
        %s202 = smul.u32 2, %s201
        %p203 = scmp.lt.s32.totalorder %s26, 1
        %s204 = scalar_select %p203, %s26, 1
        %p205 = scmp.lt.s32.totalorder %s202, 1
        %s206 = scalar_select %p205, %s202, 1
        %s207 = smul.addr %s204, 2
        %s208 = sadd.s32 %s206, %s207
        %s209 = scalar_lea.vmem %s2, %s208
        %p210 = pneg %p95
        %p211 = pneg %p92
        %p212 = pneg %p123
        %p213 = pneg %p120
        %s214 = sand.u32 %s110, 1
        %s215 = scalar_lea.sflag [#allocation6], %s214
        %s216 = sand.u32 %s110, 1
        %s217 = smul.addr %s216, 2
        %s218 = scalar_lea.vmem [#allocation7], %s217
        %s219 = sadd.s32 %s27, %s28
        %s220 = smul.u32 2, %s219
        %s221 = sadd.s32 %s27, %s28
        %s222 = smul.u32 2, %s221
        %p223 = scmp.lt.s32.totalorder %s26, 1
        %s224 = scalar_select %p223, %s26, 1
        %p225 = scmp.lt.s32.totalorder %s222, 1
        %s226 = scalar_select %p225, %s222, 1
        %s227 = smul.addr %s224, 2
        %s228 = sadd.s32 %s226, %s227
        %s229 = scalar_lea.vmem %s2, %s228
        %s230 = sadd.s32 %s27, %s28
        %s231 = smul.u32 2, %s230
        %p232 = scmp.eq.s32.totalorder %s28, 0
        // Predicated region
        $region33: #{tpu_custom_call.1} parent=27 // pred_check
          %p233 = pneg %p232
        $region34: #{tpu_custom_call.1} parent=27 // pred_check_branch
          %235 = sbr.rel (%p233) target = $region36
        $region35: #{tpu_custom_call.1} parent=27 // pred_region
          %v236 = vlaneseq
          %vm237 = vcmp.ge.s32.totalorder %v236, 0
          %vm238 = vcmp.lt.s32.totalorder %v236, 256
          %vm239 = vmand %vm237, %vm238
          %240 = vst.msk [vmem:[%s218] sm:$0x3] %vm239, 0.0
        $region36: #{tpu_custom_call.1} parent=27 // pred_fallthru
          _
        %v241 = vld [vmem:[%s189] sm:$0xff]
        %v242 = vld [vmem:[%s229] sm:$0x3]
        %vm243 = vcmp.eq.s32.totalorder %v242, 255
        %s244 = sld [smem:[#allocation3]]
        %v245 = vstv %s244
        %v246 = vsel %vm243, %v245, %v242
        %v248 = vcombine.high %v241, %v241
        %vm250 = vcmask 1043456
        %v251 = vsel %vm250, %v241, -inf
        %v252 = vrot.slane %v251, 4
        %v253 = vmax.f32 %v251, %v252
        %v254 = vrot.slane %v253, 2
        %v255 = vmax.f32 %v253, %v254
        %v256 = vrot.slane %v255, 1
        %v257 = vmax.f32 %v255, %v256
        %v258 = vsel %vm250, %v248, -inf
        %v259 = vrot.slane %v258, 4
        %v260 = vmax.f32 %v258, %v259
        %v261 = vrot.slane %v260, 2
        %v262 = vmax.f32 %v260, %v261
        %v263 = vrot.slane %v262, 1
        %v264 = vmax.f32 %v262, %v263
        %v267 = vcombine.low %v257, %v264
        %v269 = vsub.f32 %v241, %v267
        %v270 = vmul.f32 %v269, 1.442695
        %v271 = vpow.pop %v270
        %v273 = vcombine.high %v271, %v271
        %v275 = vsel %vm250, %v271, 0.0
        %v276 = vrot.slane %v275, 4
        %v277 = vadd.f32 %v275, %v276
        %v278 = vrot.slane %v277, 2
        %v279 = vadd.f32 %v277, %v278
        %v280 = vrot.slane %v279, 1
        %v281 = vadd.f32 %v279, %v280
        %v282 = vsel %vm250, %v273, 0.0
        %v283 = vrot.slane %v282, 4
        %v284 = vadd.f32 %v282, %v283
        %v285 = vrot.slane %v284, 2
        %v286 = vadd.f32 %v284, %v285
        %v287 = vrot.slane %v286, 1
        %v288 = vadd.f32 %v286, %v287
        %v289 = vlaneseq
        %v290 = vshrl.u32 %v289, 7
        %v291 = vlaneseq
        %v292 = vshrl.u32 %v291, 7
        %v293 = vsub.s32 0, %v292
        %v294 = vrot.slane %v246, %v293
        %v295 = vlaneseq
        %v296 = vshrl.u32 %v295, 7
        %v297 = vsub.s32 1, %v296
        %v298 = vrot.slane %v246, %v297
        %vm299 = vcmp.eq.s32.totalorder %v290, %v294
        %vm300 = vcmp.eq.s32.totalorder %v290, %v298
        %v301 = vsel %vm299, %v241, 0.0
        %v302 = vsel %vm300, %v248, 0.0
        %v303 = vsel %vm250, %v301, 0.0
        %v304 = vrot.slane %v303, 4
        %v305 = vadd.f32 %v303, %v304
        %v306 = vrot.slane %v305, 2
        %v307 = vadd.f32 %v305, %v306
        %v308 = vrot.slane %v307, 1
        %v309 = vadd.f32 %v307, %v308
        %v310 = vsel %vm250, %v302, 0.0
        %v311 = vrot.slane %v310, 4
        %v312 = vadd.f32 %v310, %v311
        %v313 = vrot.slane %v312, 2
        %v314 = vadd.f32 %v312, %v313
        %v315 = vrot.slane %v314, 1
        %v316 = vadd.f32 %v314, %v315
        %v317 = vsub.f32 %v309, %v257
        %v318 = vsub.f32 %v316, %v264
        %v319 = vlog2.pop %v281
        %v320 = vmul.f32 %v319, 0.6931472
        %v321 = vlog2.pop %v288
        %v322 = vmul.f32 %v321, 0.6931472
        %v323 = vsub.f32 %v317, %v320
        %v324 = vsub.f32 %v318, %v322
        %v325 = vmul.f32 %v323, 0.4
        %v326 = vmul.f32 %v324, 0.4
        %v327 = vmul.f32 %v325, 1.442695
        %v328 = vpow.pop %v327
        %v329 = vmul.f32 %v326, 1.442695
        %v330 = vpow.pop %v329
        %v331 = vld [vmem:[%s218] sm:$0x3]
        %v334 = vcombine.low %v328, %v330
        %v336 = vunpack.c.l.s4 1966171168
        %v337 = vunpack.c.0.s8 %v336
        %v338 = vlaneseq
        %v339 = vshrl.u32 %v338, 7
        %v340 = vsub.s32 %v337, %v339
        %v341 = vrot.slane %v334, %v340
        %v343 = vunpack.c.l.s4 1966171168
        %v344 = vunpack.c.0.s8 %v343
        %v345 = vlaneseq
        %v346 = vshrl.u32 %v345, 7
        %v347 = vsub.s32 %v344, %v346
        %v348 = vrot.slane %v341, %v347
        %v350 = vadd.f32 %v331, %v348
        %v351 = vlaneseq
        %vm352 = vcmp.ge.s32.totalorder %v351, 0
        %vm353 = vcmp.lt.s32.totalorder %v351, 256
        %vm354 = vmand %vm352, %vm353
        %355 = vst.msk [vmem:[%s218] sm:$0x3] %vm354, %v350
        %s356 = sand.u32 %s110, 1
        %s357 = scalar_lea.sflag [#allocation6], %s356
        %s358 = sand.u32 %s110, 1
        %s359 = smul.addr %s358, 2
        %s360 = scalar_lea.vmem [#allocation7], %s359
        // Predicated region
        $region37: #{tpu_custom_call.1} parent=27 // pred_check
          %p361 = pneg %p120
        $region38: #{tpu_custom_call.1} parent=27 // pred_check_branch
          %363 = sbr.rel (%p361) target = $region40
        $region39: #{tpu_custom_call.1} parent=27 // pred_region
          %s365 = ssub.s32 32, 32
          %366 = vsyncadd %s357, %s365
          %s367 = smul.addr %s27, 2
          %s368 = smul.addr %s26, 2
          %s369 = sadd.s32 %s367, %s368
          %s370 = smul.addr %s369, 16
          %s371 = scalar_lea.hbm %s3, %s370
          %s373 = sshll.u32 %s360, 4
          %s374 = int_to_ptr.vmem [resolvable:$true] %s373
          %376 = dma.vmem_to_hbm [thread:$0]  %s374, 32, %s371, %s357
        $region40: #{tpu_custom_call.1} parent=27 // pred_fallthru
          _
      $region28: #{tpu_custom_call.1} parent=5 // pred_fallthru
        _
      %p377 = scmp.le.s32.totalorder 2, %s16
      // Predicated region
      $region41: #{tpu_custom_call.1} parent=5 // pred_check
        %p378 = pneg %p377
      $region42: #{tpu_custom_call.1} parent=5 // pred_check_branch
        %380 = sbr.rel (%p378) target = $region44
      $region43: #{tpu_custom_call.1} parent=5 // pred_region
        %s381 = ssub.s32 %s16, 2
        // Predicated region
        $region45: #{tpu_custom_call.1} parent=43 // pred_check
          %p382 = pneg %p126
        $region46: #{tpu_custom_call.1} parent=43 // pred_check_branch
          %384 = sbr.rel (%p382) target = $region48
        $region47: #{tpu_custom_call.1} parent=43 // pred_region
          %s385 = sand.u32 %s111, 1
          %s386 = scalar_lea.sflag [#allocation6], %s385
          %s387 = sand.u32 %s111, 1
          %s388 = smul.addr %s387, 2
          %s389 = scalar_lea.vmem [#allocation7], %s388
          %390 = dma.done %s386, 32
        $region48: #{tpu_custom_call.1} parent=43 // pred_fallthru
          _
      $region44: #{tpu_custom_call.1} parent=5 // pred_fallthru
        _
    $region6: #{tpu_custom_call.1} parent=1 // loop_footer
      %s20 = sadd.s32 1, %s16
    $region7: #{tpu_custom_call.1} parent=1 // loop_footer_branch
      %15 = sbr.rel target = $region3
    $region8: #{tpu_custom_call.1} parent=1 // loop_exit
      _
    %391 = vsyncpa [#allocation5], 1
    %s392 = scalar_lea.sflag [#allocation5], 1
    %393 = vsyncpa %s392, 1
    %394 = vsyncpa [#allocation6], 1
    %s395 = scalar_lea.sflag [#allocation6], 1
    %396 = vsyncpa %s395, 1

</llo_original>
